<compile_context>
chip_gen: v7x
topology: tpu7x:2x2x1
jax: 0.10.0
libtpu: 0.0.40
codegen_flags: <defaults>
</compile_context>

<pallas_src>
import jax
import jax.numpy as jnp
from jax.experimental import pallas as pl
from jax.experimental.pallas import tpu as pltpu


# ----------------------------- Pallas kernel --------------------------------

def _pos_enc_kernel(x_ref, pe_ref, out_ref):
    # x_ref:  (ts, B, D) — (B, D) sits on the (sublane, lane) axes: dense vregs.
    # pe_ref: (ts, D)    — broadcast over the batch (sublane) axis in-register.
    out_ref[...] = x_ref[...] + pe_ref[...][:, None, :]


# ------------------------------ JAX wrapper ----------------------------------

_VMEM_BUDGET_BYTES = 12 << 20   # conservative: fits v5e's 16 MiB default scoped VMEM
_MAX_SEQ_TILE = 1024            # HBM roofline plateaus around 512-1024 seq rows


def _round_up8(n):
    return ((n + 7) // 8) * 8


def _pick_seq_tile(S, B, D, itemsize):
    """Largest seq tile fitting the VMEM budget (double-buffered x, out, squeezed pe)."""
    per_row = 2 * (2 * B * D + D) * itemsize          # (x + out + pe) * 2 buffers
    cap = max(8, (min(_VMEM_BUDGET_BYTES // per_row, _MAX_SEQ_TILE) // 8) * 8)
    ts = min(cap, _round_up8(S))                      # multiple of 8 (pe sublane dim)
    n_tiles = pl.cdiv(S, ts)
    # v7x shards a "parallel" grid axis over 2 TensorCores: prefer an even tile
    # count when tiling at all, so neither core sits idle.
    if n_tiles > 1 and n_tiles % 2 == 1:
        ts = min(cap, _round_up8(pl.cdiv(S, n_tiles + 1)))
        n_tiles = pl.cdiv(S, ts)
    return ts, n_tiles


@jax.jit
def learnable_positional_encoding(x, pe):
    """x: (S, B, D); pe: (max_len, 1, D) with max_len >= S. Eval-mode forward."""
    S, B, D = x.shape
    max_len = pe.shape[0]
    assert pe.shape == (max_len, 1, D), "pe must be (max_len, 1, d_model)"
    assert max_len >= S, f"max_len ({max_len}) must be >= sequence length ({S})"

    # Drop the size-1 batch dim so the pe block is (ts, D) instead of a
    # sublane-padded (ts, 1, D) -> 8x less VMEM for the pe buffers.
    pe2d = jnp.reshape(pe, (max_len, D))

    ts, n_tiles = _pick_seq_tile(S, B, D, jnp.dtype(x.dtype).itemsize)

    return pl.pallas_call(
        _pos_enc_kernel,
        out_shape=jax.ShapeDtypeStruct((S, B, D), x.dtype),
        grid_spec=pltpu.PrefetchScalarGridSpec(
            num_scalar_prefetch=0,
            grid=(n_tiles,),
            in_specs=[
                # (B, D) equal the full array dims -> always a legal block.
                pl.BlockSpec((ts, B, D), lambda s: (s, 0, 0)),
                # pe[:S] handled via the index_map: only seq-blocks < cdiv(S, ts)
                # are ever DMA'd; ragged-tail rows (>= S) are masked on write.
                pl.BlockSpec((ts, D), lambda s: (s, 0)),
            ],
            out_specs=pl.BlockSpec((ts, B, D), lambda s: (s, 0, 0)),
        ),
        compiler_params=pltpu.CompilerParams(
            dimension_semantics=("parallel",)),
    )(x, pe2d)


# ----------------------------------- main ------------------------------------

if __name__ == "__main__":
    # Small shapes implied by the module's forward:
    #   x: [sequence length, batch size, embed dim]
    seq_len = 48      # fits a single VMEM-budgeted tile -> grid=(1,)
    batch = 8         # full f32 sublane tile (8)
    d_model = 128     # full 128-lane vreg width
    max_len = 64      # pe parameter length (>= seq_len)

    key = jax.random.PRNGKey(0)
    kx, kp = jax.random.split(key)

    x = jax.random.normal(kx, (seq_len, batch, d_model), dtype=jnp.float32)
    # nn.init.uniform_(self.pe, -0.02, 0.02)
    pe = jax.random.uniform(kp, (max_len, 1, d_model),
                            minval=-0.02, maxval=0.02, dtype=jnp.float32)

    out = jax.block_until_ready(learnable_positional_encoding(x, pe))

    # Pure-JAX reference (eval-mode dropout == identity).
    ref = x + pe[:seq_len]

    assert out.shape == (seq_len, batch, d_model)
    assert jnp.allclose(out, ref, atol=1e-6, rtol=1e-6)

    print("KERNEL_OK")
</pallas_src>

<mosaic_0001>
module attributes {stable_mosaic.version = 11 : i64} {
  func.func @_pos_enc_kernel(%arg0: i32, %arg1: memref<48x8x128xf32, #tpu.memory_space<vmem>>, %arg2: memref<48x128xf32, #tpu.memory_space<vmem>>, %arg3: memref<48x8x128xf32, #tpu.memory_space<vmem>>) attributes {dimension_semantics = [#tpu.dimension_semantics<parallel>], iteration_bounds = array<i64: 1>, scalar_prefetch = 0 : i64, scratch_operands = 0 : i64, tpu.core_type = #tpu.core_type<tc>, window_params = [{transform_indices = @transform_0, window_bounds = array<i64: 48, 8, 128>}, {transform_indices = @transform_1, window_bounds = array<i64: 48, 128>}, {transform_indices = @transform_2, window_bounds = array<i64: 48, 8, 128>}]} {
    %c0 = arith.constant 0 : index
    %c0_0 = arith.constant 0 : index
    %c0_1 = arith.constant 0 : index
    %0 = vector.load %arg1[%c0, %c0_0, %c0_1] : memref<48x8x128xf32, #tpu.memory_space<vmem>>, vector<48x8x128xf32>
    %c0_2 = arith.constant 0 : index
    %c0_3 = arith.constant 0 : index
    %1 = vector.load %arg2[%c0_2, %c0_3] : memref<48x128xf32, #tpu.memory_space<vmem>>, vector<48x128xf32>
    %2 = vector.shape_cast %1 : vector<48x128xf32> to vector<48x1x128xf32>
    %3 = vector.broadcast %2 : vector<48x1x128xf32> to vector<48x8x128xf32>
    %4 = arith.addf %0, %3 : vector<48x8x128xf32>
    %c0_4 = arith.constant 0 : index
    %c0_5 = arith.constant 0 : index
    %c0_6 = arith.constant 0 : index
    %5 = vector.load %arg3[%c0_4, %c0_5, %c0_6] : memref<48x8x128xf32, #tpu.memory_space<vmem>>, vector<48x8x128xf32>
    tpu.vector_store %arg3[%c0_4, %c0_5, %c0_6], %4 {strides = array<i32>} : memref<48x8x128xf32, #tpu.memory_space<vmem>>, vector<48x8x128xf32>,
    return
  }
  func.func @transform_0(%arg0: i32) -> (i32, i32, i32) {
    %c0_i32 = arith.constant 0 : i32
    %c0_i32_0 = arith.constant 0 : i32
    %c0_i32_1 = arith.constant 0 : i32
    return %arg0, %c0_i32, %c0_i32_0 : i32, i32, i32
  }
  func.func @transform_1(%arg0: i32) -> (i32, i32) {
    %c0_i32 = arith.constant 0 : i32
    %c0_i32_0 = arith.constant 0 : i32
    return %arg0, %c0_i32 : i32, i32
  }
  func.func @transform_2(%arg0: i32) -> (i32, i32, i32) {
    %c0_i32 = arith.constant 0 : i32
    %c0_i32_0 = arith.constant 0 : i32
    %c0_i32_1 = arith.constant 0 : i32
    return %arg0, %c0_i32, %c0_i32_0 : i32, i32, i32
  }
}

</mosaic_0001>

<llo_original>
// kernel: learnable_positional_encoding.1
$region0: #{learnable_positional_encoding.1}
  #allocation0 [shape = 'u32[]', space=smem, size = 0x4, offset = 0x4, fixed_abs, tag = 'smem constant byte address 0x4 - core index']
  #allocation1 [shape = 'u32[144,128]{1,0:T(1,128)}', space=vmem, size = 0x12000, scoped, tag = 'internal scratch']
  %s0 = inlined_call_operand.hbm [shape: f32[48,8,128], index: 0, kind: input, shape index: {}]
  %s1 = inlined_call_operand.hbm [shape: f32[64,128], index: 1, kind: input, shape index: {}]
  %s2 = inlined_call_operand.hbm [shape: f32[48,8,128], index: 2, kind: output, shape index: {}]
  %s3 = sld [smem:[#allocation0]]
  $region26: #{learnable_positional_encoding.1} parent=0
    _
  %s5 = ssub.s32 1, %s3
  %s6 = scalar_select 0, %s5, %s3
  $region1: #{learnable_positional_encoding.1} parent=0
    #allocation2 [shape = 'u8[196608]{0}', space=vmem, size = 0x30000, scoped, tag = 'input window, operand 0, single buffered']
    #allocation3 [shape = 's32[1]{0}', space=sflag, size = 0x4, scoped, tag = 'scoped memory for learnable_positional_encoding.1']
    #allocation4 [shape = 's32[1]{0}', space=sflag, size = 0x4, scoped, tag = 'scoped memory for learnable_positional_encoding.1']
    #allocation5 [shape = 'u8[24576]{0}', space=vmem, size = 0x6000, scoped, tag = 'input window, operand 1, single buffered']
    #allocation6 [shape = 's32[1]{0}', space=sflag, size = 0x4, scoped, tag = 'scoped memory for learnable_positional_encoding.1']
    #allocation7 [shape = 'u8[196608]{0}', space=vmem, size = 0x30000, scoped, tag = 'output window, operand 0, single buffered']
    %7 = vsyncpa [#allocation3], 0
    %8 = vsyncpa [#allocation6], 0
    %9 = vsyncpa [#allocation4], 0
    // Predicated region
    $region2: #{learnable_positional_encoding.1} parent=1 // pred_check
      _
    $region3: #{learnable_positional_encoding.1} parent=1 // pred_check_branch
      %11 = sbr.rel (0) target = $region5
    $region4: #{learnable_positional_encoding.1} parent=1 // pred_region
      %s13 = ssub.s32 6144, 6144
      %14 = vsyncadd [#allocation3], %s13
      %s15 = sshll.u32 [#allocation2], 4
      %s16 = int_to_ptr.vmem [resolvable:$true] %s15
      %21 = dma.hbm_to_vmem [thread:$0]  %s0, 6144, %s16, [#allocation3], 128, 128, 8
    $region5: #{learnable_positional_encoding.1} parent=1 // pred_fallthru
      _
    // Predicated region
    $region6: #{learnable_positional_encoding.1} parent=1 // pred_check
      _
    $region7: #{learnable_positional_encoding.1} parent=1 // pred_check_branch
      %23 = sbr.rel (0) target = $region9
    $region8: #{learnable_positional_encoding.1} parent=1 // pred_region
      %s25 = ssub.s32 768, 768
      %26 = vsyncadd [#allocation6], %s25
      %s27 = sshll.u32 [#allocation5], 4
      %s28 = int_to_ptr.vmem [resolvable:$true] %s27
      %33 = dma.hbm_to_vmem [thread:$0]  %s1, 768, %s28, [#allocation6], 128, 128, 8
    $region9: #{learnable_positional_encoding.1} parent=1 // pred_fallthru
      _
    // Predicated region
    $region10: #{learnable_positional_encoding.1} parent=1 // pred_check
      _
    $region11: #{learnable_positional_encoding.1} parent=1 // pred_check_branch
      %35 = sbr.rel (0) target = $region13
    $region12: #{learnable_positional_encoding.1} parent=1 // pred_region
      %36 = dma.done [#allocation3], 6144
    $region13: #{learnable_positional_encoding.1} parent=1 // pred_fallthru
      _
    // Predicated region
    $region14: #{learnable_positional_encoding.1} parent=1 // pred_check
      _
    $region15: #{learnable_positional_encoding.1} parent=1 // pred_check_branch
      %38 = sbr.rel (0) target = $region17
    $region16: #{learnable_positional_encoding.1} parent=1 // pred_region
      %39 = dma.done [#allocation6], 768
    $region17: #{learnable_positional_encoding.1} parent=1 // pred_fallthru
      _
    %v40 = vld [vmem:[#allocation2] sm:$0xff]
    %v41 = vld [vmem:[#allocation2 + $0x8] sm:$0xff]
    %v42 = vld [vmem:[#allocation2 + $0x10] sm:$0xff]
    %v43 = vld [vmem:[#allocation2 + $0x18] sm:$0xff]
    %v44 = vld [vmem:[#allocation2 + $0x20] sm:$0xff]
    %v45 = vld [vmem:[#allocation2 + $0x28] sm:$0xff]
    %v46 = vld [vmem:[#allocation2 + $0x30] sm:$0xff]
    %v47 = vld [vmem:[#allocation2 + $0x38] sm:$0xff]
    %v48 = vld [vmem:[#allocation2 + $0x40] sm:$0xff]
    %v49 = vld [vmem:[#allocation2 + $0x48] sm:$0xff]
    %v50 = vld [vmem:[#allocation2 + $0x50] sm:$0xff]
    %v51 = vld [vmem:[#allocation2 + $0x58] sm:$0xff]
    %v52 = vld [vmem:[#allocation2 + $0x60] sm:$0xff]
    %v53 = vld [vmem:[#allocation2 + $0x68] sm:$0xff]
    %v54 = vld [vmem:[#allocation2 + $0x70] sm:$0xff]
    %v55 = vld [vmem:[#allocation2 + $0x78] sm:$0xff]
    %v56 = vld [vmem:[#allocation2 + $0x80] sm:$0xff]
    %v57 = vld [vmem:[#allocation2 + $0x88] sm:$0xff]
    %v58 = vld [vmem:[#allocation2 + $0x90] sm:$0xff]
    %v59 = vld [vmem:[#allocation2 + $0x98] sm:$0xff]
    %v60 = vld [vmem:[#allocation2 + $0xa0] sm:$0xff]
    %v61 = vld [vmem:[#allocation2 + $0xa8] sm:$0xff]
    %v62 = vld [vmem:[#allocation2 + $0xb0] sm:$0xff]
    %v63 = vld [vmem:[#allocation2 + $0xb8] sm:$0xff]
    %v64 = vld [vmem:[#allocation2 + $0xc0] sm:$0xff]
    %v65 = vld [vmem:[#allocation2 + $0xc8] sm:$0xff]
    %v66 = vld [vmem:[#allocation2 + $0xd0] sm:$0xff]
    %v67 = vld [vmem:[#allocation2 + $0xd8] sm:$0xff]
    %v68 = vld [vmem:[#allocation2 + $0xe0] sm:$0xff]
    %v69 = vld [vmem:[#allocation2 + $0xe8] sm:$0xff]
    %v70 = vld [vmem:[#allocation2 + $0xf0] sm:$0xff]
    %v71 = vld [vmem:[#allocation2 + $0xf8] sm:$0xff]
    %v72 = vld [vmem:[#allocation2 + $0x100] sm:$0xff]
    %v73 = vld [vmem:[#allocation2 + $0x108] sm:$0xff]
    %v74 = vld [vmem:[#allocation2 + $0x110] sm:$0xff]
    %v75 = vld [vmem:[#allocation2 + $0x118] sm:$0xff]
    %v76 = vld [vmem:[#allocation2 + $0x120] sm:$0xff]
    %v77 = vld [vmem:[#allocation2 + $0x128] sm:$0xff]
    %v78 = vld [vmem:[#allocation2 + $0x130] sm:$0xff]
    %v79 = vld [vmem:[#allocation2 + $0x138] sm:$0xff]
    %v80 = vld [vmem:[#allocation2 + $0x140] sm:$0xff]
    %v81 = vld [vmem:[#allocation2 + $0x148] sm:$0xff]
    %v82 = vld [vmem:[#allocation2 + $0x150] sm:$0xff]
    %v83 = vld [vmem:[#allocation2 + $0x158] sm:$0xff]
    %v84 = vld [vmem:[#allocation2 + $0x160] sm:$0xff]
    %v85 = vld [vmem:[#allocation2 + $0x168] sm:$0xff]
    %v86 = vld [vmem:[#allocation2 + $0x170] sm:$0xff]
    %v87 = vld [vmem:[#allocation2 + $0x178] sm:$0xff]
    %v88 = vld [vmem:[#allocation5] sm:$0xff]
    %v89 = vld [vmem:[#allocation5 + $0x8] sm:$0xff]
    %v90 = vld [vmem:[#allocation5 + $0x10] sm:$0xff]
    %v91 = vld [vmem:[#allocation5 + $0x18] sm:$0xff]
    %v92 = vld [vmem:[#allocation5 + $0x20] sm:$0xff]
    %v93 = vld [vmem:[#allocation5 + $0x28] sm:$0xff]
    %v100 = vcombine.high %v88, %v88
    %v102 = vunpack.c.l.s4 1966171168
    %v103 = vunpack.c.0.s8 %v102
    %v104 = vlaneseq
    %v105 = vshrl.u32 %v104, 7
    %v106 = vsub.s32 %v103, %v105
    %v107 = vrot.slane %v88, %v106
    %v109 = vunpack.c.l.s4 1966171168
    %v110 = vunpack.c.0.s8 %v109
    %v111 = vlaneseq
    %v112 = vshrl.u32 %v111, 7
    %v113 = vsub.s32 %v110, %v112
    %v114 = vrot.slane %v100, %v113
    %v115 = vcombine.high %v107, %v107
    %v116 = vcombine.high %v114, %v114
    %v118 = vunpack.c.l.s4 1966171168
    %v119 = vunpack.c.0.s8 %v118
    %v120 = vlaneseq
    %v121 = vshrl.u32 %v120, 7
    %v122 = vsub.s32 %v119, %v121
    %v123 = vrot.slane %v107, %v122
    %v125 = vunpack.c.l.s4 1966171168
    %v126 = vunpack.c.0.s8 %v125
    %v127 = vlaneseq
    %v128 = vshrl.u32 %v127, 7
    %v129 = vsub.s32 %v126, %v128
    %v130 = vrot.slane %v114, %v129
    %v132 = vunpack.c.l.s4 1966171168
    %v133 = vunpack.c.0.s8 %v132
    %v134 = vlaneseq
    %v135 = vshrl.u32 %v134, 7
    %v136 = vsub.s32 %v133, %v135
    %v137 = vrot.slane %v115, %v136
    %v139 = vunpack.c.l.s4 1966171168
    %v140 = vunpack.c.0.s8 %v139
    %v141 = vlaneseq
    %v142 = vshrl.u32 %v141, 7
    %v143 = vsub.s32 %v140, %v142
    %v144 = vrot.slane %v116, %v143
    %v145 = vcombine.high %v123, %v123
    %v146 = vcombine.high %v130, %v130
    %v147 = vcombine.high %v137, %v137
    %v148 = vcombine.high %v144, %v144
    %v149 = vcombine.high %v89, %v89
    %v151 = vunpack.c.l.s4 1966171168
    %v152 = vunpack.c.0.s8 %v151
    %v153 = vlaneseq
    %v154 = vshrl.u32 %v153, 7
    %v155 = vsub.s32 %v152, %v154
    %v156 = vrot.slane %v89, %v155
    %v158 = vunpack.c.l.s4 1966171168
    %v159 = vunpack.c.0.s8 %v158
    %v160 = vlaneseq
    %v161 = vshrl.u32 %v160, 7
    %v162 = vsub.s32 %v159, %v161
    %v163 = vrot.slane %v149, %v162
    %v164 = vcombine.high %v156, %v156
    %v165 = vcombine.high %v163, %v163
    %v167 = vunpack.c.l.s4 1966171168
    %v168 = vunpack.c.0.s8 %v167
    %v169 = vlaneseq
    %v170 = vshrl.u32 %v169, 7
    %v171 = vsub.s32 %v168, %v170
    %v172 = vrot.slane %v156, %v171
    %v174 = vunpack.c.l.s4 1966171168
    %v175 = vunpack.c.0.s8 %v174
    %v176 = vlaneseq
    %v177 = vshrl.u32 %v176, 7
    %v178 = vsub.s32 %v175, %v177
    %v179 = vrot.slane %v163, %v178
    %v181 = vunpack.c.l.s4 1966171168
    %v182 = vunpack.c.0.s8 %v181
    %v183 = vlaneseq
    %v184 = vshrl.u32 %v183, 7
    %v185 = vsub.s32 %v182, %v184
    %v186 = vrot.slane %v164, %v185
    %v188 = vunpack.c.l.s4 1966171168
    %v189 = vunpack.c.0.s8 %v188
    %v190 = vlaneseq
    %v191 = vshrl.u32 %v190, 7
    %v192 = vsub.s32 %v189, %v191
    %v193 = vrot.slane %v165, %v192
    %v194 = vcombine.high %v172, %v172
    %v195 = vcombine.high %v179, %v179
    %v196 = vcombine.high %v186, %v186
    %v197 = vcombine.high %v193, %v193
    %v198 = vcombine.high %v90, %v90
    %v200 = vunpack.c.l.s4 1966171168
    %v201 = vunpack.c.0.s8 %v200
    %v202 = vlaneseq
    %v203 = vshrl.u32 %v202, 7
    %v204 = vsub.s32 %v201, %v203
    %v205 = vrot.slane %v90, %v204
    %v207 = vunpack.c.l.s4 1966171168
    %v208 = vunpack.c.0.s8 %v207
    %v209 = vlaneseq
    %v210 = vshrl.u32 %v209, 7
    %v211 = vsub.s32 %v208, %v210
    %v212 = vrot.slane %v198, %v211
    %v213 = vcombine.high %v205, %v205
    %v214 = vcombine.high %v212, %v212
    %v216 = vunpack.c.l.s4 1966171168
    %v217 = vunpack.c.0.s8 %v216
    %v218 = vlaneseq
    %v219 = vshrl.u32 %v218, 7
    %v220 = vsub.s32 %v217, %v219
    %v221 = vrot.slane %v205, %v220
    %v223 = vunpack.c.l.s4 1966171168
    %v224 = vunpack.c.0.s8 %v223
    %v225 = vlaneseq
    %v226 = vshrl.u32 %v225, 7
    %v227 = vsub.s32 %v224, %v226
    %v228 = vrot.slane %v212, %v227
    %v230 = vunpack.c.l.s4 1966171168
    %v231 = vunpack.c.0.s8 %v230
    %v232 = vlaneseq
    %v233 = vshrl.u32 %v232, 7
    %v234 = vsub.s32 %v231, %v233
    %v235 = vrot.slane %v213, %v234
    %v237 = vunpack.c.l.s4 1966171168
    %v238 = vunpack.c.0.s8 %v237
    %v239 = vlaneseq
    %v240 = vshrl.u32 %v239, 7
    %v241 = vsub.s32 %v238, %v240
    %v242 = vrot.slane %v214, %v241
    %v243 = vcombine.high %v221, %v221
    %v244 = vcombine.high %v228, %v228
    %v245 = vcombine.high %v235, %v235
    %v246 = vcombine.high %v242, %v242
    %v247 = vcombine.high %v91, %v91
    %v249 = vunpack.c.l.s4 1966171168
    %v250 = vunpack.c.0.s8 %v249
    %v251 = vlaneseq
    %v252 = vshrl.u32 %v251, 7
    %v253 = vsub.s32 %v250, %v252
    %v254 = vrot.slane %v91, %v253
    %v256 = vunpack.c.l.s4 1966171168
    %v257 = vunpack.c.0.s8 %v256
    %v258 = vlaneseq
    %v259 = vshrl.u32 %v258, 7
    %v260 = vsub.s32 %v257, %v259
    %v261 = vrot.slane %v247, %v260
    %v262 = vcombine.high %v254, %v254
    %v263 = vcombine.high %v261, %v261
    %v265 = vunpack.c.l.s4 1966171168
    %v266 = vunpack.c.0.s8 %v265
    %v267 = vlaneseq
    %v268 = vshrl.u32 %v267, 7
    %v269 = vsub.s32 %v266, %v268
    %v270 = vrot.slane %v254, %v269
    %v272 = vunpack.c.l.s4 1966171168
    %v273 = vunpack.c.0.s8 %v272
    %v274 = vlaneseq
    %v275 = vshrl.u32 %v274, 7
    %v276 = vsub.s32 %v273, %v275
    %v277 = vrot.slane %v261, %v276
    %v279 = vunpack.c.l.s4 1966171168
    %v280 = vunpack.c.0.s8 %v279
    %v281 = vlaneseq
    %v282 = vshrl.u32 %v281, 7
    %v283 = vsub.s32 %v280, %v282
    %v284 = vrot.slane %v262, %v283
    %v286 = vunpack.c.l.s4 1966171168
    %v287 = vunpack.c.0.s8 %v286
    %v288 = vlaneseq
    %v289 = vshrl.u32 %v288, 7
    %v290 = vsub.s32 %v287, %v289
    %v291 = vrot.slane %v263, %v290
    %v292 = vcombine.high %v270, %v270
    %v293 = vcombine.high %v277, %v277
    %v294 = vcombine.high %v284, %v284
    %v295 = vcombine.high %v291, %v291
    %v296 = vcombine.high %v92, %v92
    %v298 = vunpack.c.l.s4 1966171168
    %v299 = vunpack.c.0.s8 %v298
    %v300 = vlaneseq
    %v301 = vshrl.u32 %v300, 7
    %v302 = vsub.s32 %v299, %v301
    %v303 = vrot.slane %v92, %v302
    %v305 = vunpack.c.l.s4 1966171168
    %v306 = vunpack.c.0.s8 %v305
    %v307 = vlaneseq
    %v308 = vshrl.u32 %v307, 7
    %v309 = vsub.s32 %v306, %v308
    %v310 = vrot.slane %v296, %v309
    %v311 = vcombine.high %v303, %v303
    %v312 = vcombine.high %v310, %v310
    %v314 = vunpack.c.l.s4 1966171168
    %v315 = vunpack.c.0.s8 %v314
    %v316 = vlaneseq
    %v317 = vshrl.u32 %v316, 7
    %v318 = vsub.s32 %v315, %v317
    %v319 = vrot.slane %v303, %v318
    %v321 = vunpack.c.l.s4 1966171168
    %v322 = vunpack.c.0.s8 %v321
    %v323 = vlaneseq
    %v324 = vshrl.u32 %v323, 7
    %v325 = vsub.s32 %v322, %v324
    %v326 = vrot.slane %v310, %v325
    %v328 = vunpack.c.l.s4 1966171168
    %v329 = vunpack.c.0.s8 %v328
    %v330 = vlaneseq
    %v331 = vshrl.u32 %v330, 7
    %v332 = vsub.s32 %v329, %v331
    %v333 = vrot.slane %v311, %v332
    %v335 = vunpack.c.l.s4 1966171168
    %v336 = vunpack.c.0.s8 %v335
    %v337 = vlaneseq
    %v338 = vshrl.u32 %v337, 7
    %v339 = vsub.s32 %v336, %v338
    %v340 = vrot.slane %v312, %v339
    %v341 = vcombine.high %v319, %v319
    %v342 = vcombine.high %v326, %v326
    %v343 = vcombine.high %v333, %v333
    %v344 = vcombine.high %v340, %v340
    %v345 = vcombine.high %v93, %v93
    %v347 = vunpack.c.l.s4 1966171168
    %v348 = vunpack.c.0.s8 %v347
    %v349 = vlaneseq
    %v350 = vshrl.u32 %v349, 7
    %v351 = vsub.s32 %v348, %v350
    %v352 = vrot.slane %v93, %v351
    %v354 = vunpack.c.l.s4 1966171168
    %v355 = vunpack.c.0.s8 %v354
    %v356 = vlaneseq
    %v357 = vshrl.u32 %v356, 7
    %v358 = vsub.s32 %v355, %v357
    %v359 = vrot.slane %v345, %v358
    %v360 = vcombine.high %v352, %v352
    %v361 = vcombine.high %v359, %v359
    %v363 = vunpack.c.l.s4 1966171168
    %v364 = vunpack.c.0.s8 %v363
    %v365 = vlaneseq
    %v366 = vshrl.u32 %v365, 7
    %v367 = vsub.s32 %v364, %v366
    %v368 = vrot.slane %v352, %v367
    %v370 = vunpack.c.l.s4 1966171168
    %v371 = vunpack.c.0.s8 %v370
    %v372 = vlaneseq
    %v373 = vshrl.u32 %v372, 7
    %v374 = vsub.s32 %v371, %v373
    %v375 = vrot.slane %v359, %v374
    %v377 = vunpack.c.l.s4 1966171168
    %v378 = vunpack.c.0.s8 %v377
    %v379 = vlaneseq
    %v380 = vshrl.u32 %v379, 7
    %v381 = vsub.s32 %v378, %v380
    %v382 = vrot.slane %v360, %v381
    %v384 = vunpack.c.l.s4 1966171168
    %v385 = vunpack.c.0.s8 %v384
    %v386 = vlaneseq
    %v387 = vshrl.u32 %v386, 7
    %v388 = vsub.s32 %v385, %v387
    %v389 = vrot.slane %v361, %v388
    %v390 = vcombine.high %v368, %v368
    %v391 = vcombine.high %v375, %v375
    %v392 = vcombine.high %v382, %v382
    %v393 = vcombine.high %v389, %v389
    %v394 = vlaneseq
    %v395 = vshrl.u32 %v394, 7
    %v396 = vsub.s32 0, %v395
    %v397 = vrot.slane %v123, %v396
    %v398 = vlaneseq
    %v399 = vshrl.u32 %v398, 7
    %v400 = vsub.s32 0, %v399
    %v401 = vrot.slane %v137, %v400
    %v402 = vlaneseq
    %v403 = vshrl.u32 %v402, 7
    %v404 = vsub.s32 0, %v403
    %v405 = vrot.slane %v145, %v404
    %v406 = vlaneseq
    %v407 = vshrl.u32 %v406, 7
    %v408 = vsub.s32 0, %v407
    %v409 = vrot.slane %v147, %v408
    %v410 = vlaneseq
    %v411 = vshrl.u32 %v410, 7
    %v412 = vsub.s32 0, %v411
    %v413 = vrot.slane %v130, %v412
    %v414 = vlaneseq
    %v415 = vshrl.u32 %v414, 7
    %v416 = vsub.s32 0, %v415
    %v417 = vrot.slane %v144, %v416
    %v418 = vlaneseq
    %v419 = vshrl.u32 %v418, 7
    %v420 = vsub.s32 0, %v419
    %v421 = vrot.slane %v146, %v420
    %v422 = vlaneseq
    %v423 = vshrl.u32 %v422, 7
    %v424 = vsub.s32 0, %v423
    %v425 = vrot.slane %v148, %v424
    %v426 = vlaneseq
    %v427 = vshrl.u32 %v426, 7
    %v428 = vsub.s32 0, %v427
    %v429 = vrot.slane %v172, %v428
    %v430 = vlaneseq
    %v431 = vshrl.u32 %v430, 7
    %v432 = vsub.s32 0, %v431
    %v433 = vrot.slane %v186, %v432
    %v434 = vlaneseq
    %v435 = vshrl.u32 %v434, 7
    %v436 = vsub.s32 0, %v435
    %v437 = vrot.slane %v194, %v436
    %v438 = vlaneseq
    %v439 = vshrl.u32 %v438, 7
    %v440 = vsub.s32 0, %v439
    %v441 = vrot.slane %v196, %v440
    %v442 = vlaneseq
    %v443 = vshrl.u32 %v442, 7
    %v444 = vsub.s32 0, %v443
    %v445 = vrot.slane %v179, %v444
    %v446 = vlaneseq
    %v447 = vshrl.u32 %v446, 7
    %v448 = vsub.s32 0, %v447
    %v449 = vrot.slane %v193, %v448
    %v450 = vlaneseq
    %v451 = vshrl.u32 %v450, 7
    %v452 = vsub.s32 0, %v451
    %v453 = vrot.slane %v195, %v452
    %v454 = vlaneseq
    %v455 = vshrl.u32 %v454, 7
    %v456 = vsub.s32 0, %v455
    %v457 = vrot.slane %v197, %v456
    %v458 = vlaneseq
    %v459 = vshrl.u32 %v458, 7
    %v460 = vsub.s32 0, %v459
    %v461 = vrot.slane %v221, %v460
    %v462 = vlaneseq
    %v463 = vshrl.u32 %v462, 7
    %v464 = vsub.s32 0, %v463
    %v465 = vrot.slane %v235, %v464
    %v466 = vlaneseq
    %v467 = vshrl.u32 %v466, 7
    %v468 = vsub.s32 0, %v467
    %v469 = vrot.slane %v243, %v468
    %v470 = vlaneseq
    %v471 = vshrl.u32 %v470, 7
    %v472 = vsub.s32 0, %v471
    %v473 = vrot.slane %v245, %v472
    %v474 = vlaneseq
    %v475 = vshrl.u32 %v474, 7
    %v476 = vsub.s32 0, %v475
    %v477 = vrot.slane %v228, %v476
    %v478 = vlaneseq
    %v479 = vshrl.u32 %v478, 7
    %v480 = vsub.s32 0, %v479
    %v481 = vrot.slane %v242, %v480
    %v482 = vlaneseq
    %v483 = vshrl.u32 %v482, 7
    %v484 = vsub.s32 0, %v483
    %v485 = vrot.slane %v244, %v484
    %v486 = vlaneseq
    %v487 = vshrl.u32 %v486, 7
    %v488 = vsub.s32 0, %v487
    %v489 = vrot.slane %v246, %v488
    %v490 = vlaneseq
    %v491 = vshrl.u32 %v490, 7
    %v492 = vsub.s32 0, %v491
    %v493 = vrot.slane %v270, %v492
    %v494 = vlaneseq
    %v495 = vshrl.u32 %v494, 7
    %v496 = vsub.s32 0, %v495
    %v497 = vrot.slane %v284, %v496
    %v498 = vlaneseq
    %v499 = vshrl.u32 %v498, 7
    %v500 = vsub.s32 0, %v499
    %v501 = vrot.slane %v292, %v500
    %v502 = vlaneseq
    %v503 = vshrl.u32 %v502, 7
    %v504 = vsub.s32 0, %v503
    %v505 = vrot.slane %v294, %v504
    %v506 = vlaneseq
    %v507 = vshrl.u32 %v506, 7
    %v508 = vsub.s32 0, %v507
    %v509 = vrot.slane %v277, %v508
    %v510 = vlaneseq
    %v511 = vshrl.u32 %v510, 7
    %v512 = vsub.s32 0, %v511
    %v513 = vrot.slane %v291, %v512
    %v514 = vlaneseq
    %v515 = vshrl.u32 %v514, 7
    %v516 = vsub.s32 0, %v515
    %v517 = vrot.slane %v293, %v516
    %v518 = vlaneseq
    %v519 = vshrl.u32 %v518, 7
    %v520 = vsub.s32 0, %v519
    %v521 = vrot.slane %v295, %v520
    %v522 = vlaneseq
    %v523 = vshrl.u32 %v522, 7
    %v524 = vsub.s32 0, %v523
    %v525 = vrot.slane %v319, %v524
    %v526 = vlaneseq
    %v527 = vshrl.u32 %v526, 7
    %v528 = vsub.s32 0, %v527
    %v529 = vrot.slane %v333, %v528
    %v530 = vlaneseq
    %v531 = vshrl.u32 %v530, 7
    %v532 = vsub.s32 0, %v531
    %v533 = vrot.slane %v341, %v532
    %v534 = vlaneseq
    %v535 = vshrl.u32 %v534, 7
    %v536 = vsub.s32 0, %v535
    %v537 = vrot.slane %v343, %v536
    %v538 = vlaneseq
    %v539 = vshrl.u32 %v538, 7
    %v540 = vsub.s32 0, %v539
    %v541 = vrot.slane %v326, %v540
    %v542 = vlaneseq
    %v543 = vshrl.u32 %v542, 7
    %v544 = vsub.s32 0, %v543
    %v545 = vrot.slane %v340, %v544
    %v546 = vlaneseq
    %v547 = vshrl.u32 %v546, 7
    %v548 = vsub.s32 0, %v547
    %v549 = vrot.slane %v342, %v548
    %v550 = vlaneseq
    %v551 = vshrl.u32 %v550, 7
    %v552 = vsub.s32 0, %v551
    %v553 = vrot.slane %v344, %v552
    %v554 = vlaneseq
    %v555 = vshrl.u32 %v554, 7
    %v556 = vsub.s32 0, %v555
    %v557 = vrot.slane %v368, %v556
    %v558 = vlaneseq
    %v559 = vshrl.u32 %v558, 7
    %v560 = vsub.s32 0, %v559
    %v561 = vrot.slane %v382, %v560
    %v562 = vlaneseq
    %v563 = vshrl.u32 %v562, 7
    %v564 = vsub.s32 0, %v563
    %v565 = vrot.slane %v390, %v564
    %v566 = vlaneseq
    %v567 = vshrl.u32 %v566, 7
    %v568 = vsub.s32 0, %v567
    %v569 = vrot.slane %v392, %v568
    %v570 = vlaneseq
    %v571 = vshrl.u32 %v570, 7
    %v572 = vsub.s32 0, %v571
    %v573 = vrot.slane %v375, %v572
    %v574 = vlaneseq
    %v575 = vshrl.u32 %v574, 7
    %v576 = vsub.s32 0, %v575
    %v577 = vrot.slane %v389, %v576
    %v578 = vlaneseq
    %v579 = vshrl.u32 %v578, 7
    %v580 = vsub.s32 0, %v579
    %v581 = vrot.slane %v391, %v580
    %v582 = vlaneseq
    %v583 = vshrl.u32 %v582, 7
    %v584 = vsub.s32 0, %v583
    %v585 = vrot.slane %v393, %v584
    %v634 = vadd.f32 %v40, %v397
    %v635 = vadd.f32 %v41, %v401
    %v636 = vadd.f32 %v42, %v405
    %v637 = vadd.f32 %v43, %v409
    %v638 = vadd.f32 %v44, %v413
    %v639 = vadd.f32 %v45, %v417
    %v640 = vadd.f32 %v46, %v421
    %v641 = vadd.f32 %v47, %v425
    %v642 = vadd.f32 %v48, %v429
    %v643 = vadd.f32 %v49, %v433
    %v644 = vadd.f32 %v50, %v437
    %v645 = vadd.f32 %v51, %v441
    %v646 = vadd.f32 %v52, %v445
    %v647 = vadd.f32 %v53, %v449
    %v648 = vadd.f32 %v54, %v453
    %v649 = vadd.f32 %v55, %v457
    %v650 = vadd.f32 %v56, %v461
    %v651 = vadd.f32 %v57, %v465
    %v652 = vadd.f32 %v58, %v469
    %v653 = vadd.f32 %v59, %v473
    %v654 = vadd.f32 %v60, %v477
    %v655 = vadd.f32 %v61, %v481
    %v656 = vadd.f32 %v62, %v485
    %v657 = vadd.f32 %v63, %v489
    %v658 = vadd.f32 %v64, %v493
    %v659 = vadd.f32 %v65, %v497
    %v660 = vadd.f32 %v66, %v501
    %v661 = vadd.f32 %v67, %v505
    %v662 = vadd.f32 %v68, %v509
    %v663 = vadd.f32 %v69, %v513
    %v664 = vadd.f32 %v70, %v517
    %v665 = vadd.f32 %v71, %v521
    %v666 = vadd.f32 %v72, %v525
    %v667 = vadd.f32 %v73, %v529
    %v668 = vadd.f32 %v74, %v533
    %v669 = vadd.f32 %v75, %v537
    %v670 = vadd.f32 %v76, %v541
    %v671 = vadd.f32 %v77, %v545
    %v672 = vadd.f32 %v78, %v549
    %v673 = vadd.f32 %v79, %v553
    %v674 = vadd.f32 %v80, %v557
    %v675 = vadd.f32 %v81, %v561
    %v676 = vadd.f32 %v82, %v565
    %v677 = vadd.f32 %v83, %v569
    %v678 = vadd.f32 %v84, %v573
    %v679 = vadd.f32 %v85, %v577
    %v680 = vadd.f32 %v86, %v581
    %v681 = vadd.f32 %v87, %v585
    %682 = vst [vmem:[#allocation7] sm:$0xff] %v634
    %683 = vst [vmem:[#allocation7 + $0x8] sm:$0xff] %v635
    %684 = vst [vmem:[#allocation7 + $0x10] sm:$0xff] %v636
    %685 = vst [vmem:[#allocation7 + $0x18] sm:$0xff] %v637
    %686 = vst [vmem:[#allocation7 + $0x20] sm:$0xff] %v638
    %687 = vst [vmem:[#allocation7 + $0x28] sm:$0xff] %v639
    %688 = vst [vmem:[#allocation7 + $0x30] sm:$0xff] %v640
    %689 = vst [vmem:[#allocation7 + $0x38] sm:$0xff] %v641
    %690 = vst [vmem:[#allocation7 + $0x40] sm:$0xff] %v642
    %691 = vst [vmem:[#allocation7 + $0x48] sm:$0xff] %v643
    %692 = vst [vmem:[#allocation7 + $0x50] sm:$0xff] %v644
    %693 = vst [vmem:[#allocation7 + $0x58] sm:$0xff] %v645
    %694 = vst [vmem:[#allocation7 + $0x60] sm:$0xff] %v646
    %695 = vst [vmem:[#allocation7 + $0x68] sm:$0xff] %v647
    %696 = vst [vmem:[#allocation7 + $0x70] sm:$0xff] %v648
    %697 = vst [vmem:[#allocation7 + $0x78] sm:$0xff] %v649
    %698 = vst [vmem:[#allocation7 + $0x80] sm:$0xff] %v650
    %699 = vst [vmem:[#allocation7 + $0x88] sm:$0xff] %v651
    %700 = vst [vmem:[#allocation7 + $0x90] sm:$0xff] %v652
    %701 = vst [vmem:[#allocation7 + $0x98] sm:$0xff] %v653
    %702 = vst [vmem:[#allocation7 + $0xa0] sm:$0xff] %v654
    %703 = vst [vmem:[#allocation7 + $0xa8] sm:$0xff] %v655
    %704 = vst [vmem:[#allocation7 + $0xb0] sm:$0xff] %v656
    %705 = vst [vmem:[#allocation7 + $0xb8] sm:$0xff] %v657
    %706 = vst [vmem:[#allocation7 + $0xc0] sm:$0xff] %v658
    %707 = vst [vmem:[#allocation7 + $0xc8] sm:$0xff] %v659
    %708 = vst [vmem:[#allocation7 + $0xd0] sm:$0xff] %v660
    %709 = vst [vmem:[#allocation7 + $0xd8] sm:$0xff] %v661
    %710 = vst [vmem:[#allocation7 + $0xe0] sm:$0xff] %v662
    %711 = vst [vmem:[#allocation7 + $0xe8] sm:$0xff] %v663
    %712 = vst [vmem:[#allocation7 + $0xf0] sm:$0xff] %v664
    %713 = vst [vmem:[#allocation7 + $0xf8] sm:$0xff] %v665
    %714 = vst [vmem:[#allocation7 + $0x100] sm:$0xff] %v666
    %715 = vst [vmem:[#allocation7 + $0x108] sm:$0xff] %v667
    %716 = vst [vmem:[#allocation7 + $0x110] sm:$0xff] %v668
    %717 = vst [vmem:[#allocation7 + $0x118] sm:$0xff] %v669
    %718 = vst [vmem:[#allocation7 + $0x120] sm:$0xff] %v670
    %719 = vst [vmem:[#allocation7 + $0x128] sm:$0xff] %v671
    %720 = vst [vmem:[#allocation7 + $0x130] sm:$0xff] %v672
    %721 = vst [vmem:[#allocation7 + $0x138] sm:$0xff] %v673
    %722 = vst [vmem:[#allocation7 + $0x140] sm:$0xff] %v674
    %723 = vst [vmem:[#allocation7 + $0x148] sm:$0xff] %v675
    %724 = vst [vmem:[#allocation7 + $0x150] sm:$0xff] %v676
    %725 = vst [vmem:[#allocation7 + $0x158] sm:$0xff] %v677
    %726 = vst [vmem:[#allocation7 + $0x160] sm:$0xff] %v678
    %727 = vst [vmem:[#allocation7 + $0x168] sm:$0xff] %v679
    %728 = vst [vmem:[#allocation7 + $0x170] sm:$0xff] %v680
    %729 = vst [vmem:[#allocation7 + $0x178] sm:$0xff] %v681
    // Predicated region
    $region18: #{learnable_positional_encoding.1} parent=1 // pred_check
      _
    $region19: #{learnable_positional_encoding.1} parent=1 // pred_check_branch
      %731 = sbr.rel (0) target = $region21
    $region20: #{learnable_positional_encoding.1} parent=1 // pred_region
      %s733 = ssub.s32 6144, 6144
      %734 = vsyncadd [#allocation4], %s733
      %s735 = sshll.u32 [#allocation7], 4
      %s736 = int_to_ptr.vmem [resolvable:$true] %s735
      %741 = dma.vmem_to_hbm [thread:$0]  %s736, 6144, %s2, [#allocation4], 128, 128, 8
    $region21: #{learnable_positional_encoding.1} parent=1 // pred_fallthru
      _
    // Predicated region
    $region22: #{learnable_positional_encoding.1} parent=1 // pred_check
      _
    $region23: #{learnable_positional_encoding.1} parent=1 // pred_check_branch
      %743 = sbr.rel (0) target = $region25
    $region24: #{learnable_positional_encoding.1} parent=1 // pred_region
      %744 = dma.done [#allocation4], 6144
    $region25: #{learnable_positional_encoding.1} parent=1 // pred_fallthru
      _
    %745 = vsyncpa [#allocation3], 1
    %746 = vsyncpa [#allocation6], 1
    %747 = vsyncpa [#allocation4], 1

</llo_original>
